<compile_context>
chip_gen: v5e
topology: v5e:2x2
jax: 0.10.0
libtpu: 0.0.40
codegen_flags: <defaults>
</compile_context>

<pallas_src>
import functools

import jax
import jax.numpy as jnp
from jax import lax
from jax.experimental import pallas as pl
from jax.experimental.pallas import tpu as pltpu


# -----------------------------------------------------------------------------
# planning helpers
# -----------------------------------------------------------------------------
_FUSED_BLOCK_BYTES = 4 << 20   # f32 working bytes per fused x block (v7x 64 MiB safe)
_TILED_BLOCK_BYTES = 4 << 20   # f32 working bytes per streamed x block (fallback)
_MAX_LANE_TILE = 8192          # lane-tile upper bound for the streamed kernels


def _round_up(x, m):
    return ((x + m - 1) // m) * m


def _plan_fused(N, C, HW, budget_bytes):
    """Rows per fused block: k whole samples (k*C rows), multiple of 8 (or == N*C),
    f32 working size <= budget.  Returns None -> use the two-pass fallback."""
    best = None
    for k in range(1, N + 1):
        R = k * C
        if R * HW * 4 > budget_bytes:
            break
        if (R % 8 == 0) or (R == N * C):
            best = R                   # keep the largest that fits (amortize grid steps)
    return best


def _plan_tiled(M, HW, block_bytes=_TILED_BLOCK_BYTES, max_lane_tile=_MAX_LANE_TILE):
    """(rows, lane_tile) for the streamed kernels over the [M, HW] view."""
    hw128 = _round_up(HW, 128)
    T = min(hw128, max(128, (max_lane_tile // 128) * 128))
    cap = max(block_bytes // (T * 4), 1)
    if M <= cap:
        R = M                           # full dim — always a legal sublane block
    elif cap >= 8:
        R = (cap // 8) * 8
    else:
        R = 8 if M >= 8 else M
    return R, T


def _mosaic_params(sems, block_bytes):
    """dimension_semantics + explicit scoped-VMEM limit sized to the double-buffered
    block footprint (v5e default is only 16 MiB; v7x physical is 64 MiB -> cap 48)."""
    need = 2 * int(block_bytes) + (8 << 20)
    return pltpu.CompilerParams(
        dimension_semantics=sems,
        vmem_limit_bytes=int(min(max(need, 24 << 20), 48 << 20)))


# -----------------------------------------------------------------------------
# in-kernel math helpers
# -----------------------------------------------------------------------------
def _sigmoid(z):
    # 0.5*(1+tanh(z/2)): single EUP transcendental, no full-precision VPU divide.
    return 0.5 * (1.0 + jnp.tanh(0.5 * z))


def _group_fold(per_row, ng, cg):
    """per_row: [R,1] per-channel value; rows of one (sample, group) are the cg
    consecutive rows (fused block starts are aligned to whole samples).
    Returns per-group sums with shape [ng, 1, 1]."""
    t = per_row.reshape(ng, cg, 1)
    g = t[:, 0:1, :]
    for o in range(1, cg):
        g = g + t[:, o:o + 1, :]
    return g


def _spread(per_group, ng, cg, R):
    """[ng,1,1] per-group value -> [R,1] per-row (broadcast within each group)."""
    return jnp.broadcast_to(per_group, (ng, cg, 1)).reshape(R, 1)


# -----------------------------------------------------------------------------
# fused single-pass kernel:  stats + rsqrt + gamma fold + swish, one HBM read/write
# -----------------------------------------------------------------------------
def _fused_compute(x_ref, v_ref, g_ref, o_ref, *, cg, cnt, eps, rms):
    x = x_ref[...].astype(jnp.float32)                 # [R, HW]
    R = x.shape[0]
    ng = R // cg
    if rms:                                            # S2: sqrt(E[x^2] + eps)
        q = jnp.sum(x * x, axis=-1, keepdims=True)     # [R,1]
        qg = _group_fold(q, ng, cg)                    # [ng,1,1]
        inv = lax.rsqrt(qg * (1.0 / cnt) + eps)
    else:                                              # S0/S1: unbiased group std
        s = jnp.sum(x, axis=-1, keepdims=True)
        mean_rows = _spread(_group_fold(s, ng, cg) * (1.0 / cnt), ng, cg, R)
        d = x - mean_rows                              # centered -> no E[x^2]-mean^2
        q = jnp.sum(d * d, axis=-1, keepdims=True)     #   cancellation issue
        qg = _group_fold(q, ng, cg)
        inv = lax.rsqrt(qg * (1.0 / max(cnt - 1.0, 1.0)) + eps)
    scale = g_ref[...] * _spread(inv, ng, cg, R)       # gamma / group_std, per row
    z = x if v_ref is None else v_ref[...] * x
    y = x * _sigmoid(z) * scale
    o_ref[...] = y.astype(o_ref.dtype)


def _fused_kernel_v(x_ref, v_ref, g_ref, o_ref, *, cg, cnt, eps, rms):
    _fused_compute(x_ref, v_ref, g_ref, o_ref, cg=cg, cnt=cnt, eps=eps, rms=rms)


def _fused_kernel_nov(x_ref, g_ref, o_ref, *, cg, cnt, eps, rms):
    _fused_compute(x_ref, None, g_ref, o_ref, cg=cg, cnt=cnt, eps=eps, rms=rms)


def _fused_forward(x2, g_rows, v_rows, *, R, cg, cnt, eps, rms, use_v, out_dtype):
    M, HW = x2.shape
    nblk = pl.cdiv(M, R)
    statics = dict(cg=cg, cnt=cnt, eps=eps, rms=rms)
    if use_v:
        kern = functools.partial(_fused_kernel_v, **statics)
        arrays = (x2, v_rows, g_rows)
        in_specs = [pl.BlockSpec((R, HW), lambda i: (i, 0)),
                    pl.BlockSpec((R, 1), lambda i: (i, 0)),
                    pl.BlockSpec((R, 1), lambda i: (i, 0))]
    else:
        kern = functools.partial(_fused_kernel_nov, **statics)
        arrays = (x2, g_rows)
        in_specs = [pl.BlockSpec((R, HW), lambda i: (i, 0)),
                    pl.BlockSpec((R, 1), lambda i: (i, 0))]
    block_bytes = R * HW * (x2.dtype.itemsize + jnp.dtype(out_dtype).itemsize + 2 * 4)
    return pl.pallas_call(
        kern,
        grid=(nblk,),
        out_shape=jax.ShapeDtypeStruct((M, HW), out_dtype),
        in_specs=in_specs,
        out_specs=pl.BlockSpec((R, HW), lambda i: (i, 0)),
        compiler_params=_mosaic_params(("parallel",), block_bytes),
    )(*arrays)


# -----------------------------------------------------------------------------
# two-pass fallback (per-sample slab too large for VMEM)
# -----------------------------------------------------------------------------
def _stats_kernel(x_ref, sum_ref, sq_ref, *, hw, tile, tiles_per_split,
                  needs_mask, nchunks):
    # x_ref: [R, T]; accumulators: [1, R, 128] lane-dense partials, resident across
    # the last ("arbitrary") grid axis.  Final 128->1 reduce happens in JAX.
    p = pl.program_id(0)
    j = pl.program_id(2)

    @pl.when(j == 0)
    def _():
        sum_ref[...] = jnp.zeros_like(sum_ref)
        sq_ref[...] = jnp.zeros_like(sq_ref)

    x = x_ref[...].astype(jnp.float32)
    R = x.shape[0]
    col0 = (p * tiles_per_split + j) * tile
    if needs_mask:
        lane = lax.broadcasted_iota(jnp.int32, (R, 128), 1)
    acc_s = jnp.zeros((R, 128), jnp.float32)
    acc_q = jnp.zeros((R, 128), jnp.float32)
    for c in range(nchunks):                           # VALU adds over 128-lane slices
        v = x[:, c * 128:(c + 1) * 128]
        if needs_mask:
            v = jnp.where(col0 + c * 128 + lane < hw, v, 0.0)
        acc_s = acc_s + v
        acc_q = acc_q + v * v
    sum_ref[...] += acc_s[None]
    sq_ref[...] += acc_q[None]


def _apply_kernel_v(x_ref, v_ref, s_ref, o_ref):
    x = x_ref[...].astype(jnp.float32)
    o_ref[...] = (x * _sigmoid(v_ref[...] * x) * s_ref[...]).astype(o_ref.dtype)


def _apply_kernel_nov(x_ref, s_ref, o_ref):
    x = x_ref[...].astype(jnp.float32)
    o_ref[...] = (x * _sigmoid(x) * s_ref[...]).astype(o_ref.dtype)


def _two_pass_forward(x2, g_rows, v_rows, *, N, C, G, cg, cnt, eps, rms, use_v,
                      out_dtype, max_lane_tile):
    M, HW = x2.shape
    R, T = _plan_tiled(M, HW, max_lane_tile=max_lane_tile)
    n_rb = pl.cdiv(M, R)
    n_tiles = pl.cdiv(HW, T)
    # 2-way parallel split of the HW-tile axis (keeps both v7x TCs busy at small batch);
    # only when it splits evenly so no block index ever goes fully out of range.
    nsplit = 2 if (n_tiles >= 2 and n_tiles % 2 == 0) else 1
    tps = n_tiles // nsplit
    needs_mask = (HW % T) != 0
    nchunks = T // 128

    stats = functools.partial(_stats_kernel, hw=HW, tile=T, tiles_per_split=tps,
                              needs_mask=needs_mask, nchunks=nchunks)
    sums, sqs = pl.pallas_call(
        stats,
        grid=(nsplit, n_rb, tps),
        out_shape=(jax.ShapeDtypeStruct((nsplit, M, 128), jnp.float32),
                   jax.ShapeDtypeStruct((nsplit, M, 128), jnp.float32)),
        in_specs=[pl.BlockSpec((R, T), lambda p, i, j: (i, p * tps + j))],
        out_specs=(pl.BlockSpec((1, R, 128), lambda p, i, j: (p, i, 0)),
                   pl.BlockSpec((1, R, 128), lambda p, i, j: (p, i, 0))),
        compiler_params=_mosaic_params(
            ("parallel", "parallel", "arbitrary"),
            R * T * (x2.dtype.itemsize + 4) + 4 * R * 128 * 4),
    )(x2)

    # tiny finalize in plain JAX
    sum_c = jnp.sum(sums, axis=(0, 2))                 # [M]
    sq_c = jnp.sum(sqs, axis=(0, 2))
    sum_g = sum_c.reshape(N, G, cg).sum(-1)            # [N, G]
    sq_g = sq_c.reshape(N, G, cg).sum(-1)
    if rms:
        inv = lax.rsqrt(sq_g / cnt + eps)
    else:
        # TODO(synk): streaming fallback keeps one-pass E[x^2]-mean^2 (fused path uses
        # the numerically-stable centered form); acceptable for f32 activations.
        mean = sum_g / cnt
        var_b = jnp.maximum(sq_g / cnt - mean * mean, 0.0)
        inv = lax.rsqrt(var_b * (cnt / max(cnt - 1.0, 1.0)) + eps)
    inv_rows = jnp.broadcast_to(inv[:, :, None], (N, G, cg)).reshape(M, 1)
    scale_rows = g_rows * inv_rows

    if use_v:
        kern = _apply_kernel_v
        arrays = (x2, v_rows, scale_rows)
        in_specs = [pl.BlockSpec((R, T), lambda i, j: (i, j)),
                    pl.BlockSpec((R, 1), lambda i, j: (i, 0)),
                    pl.BlockSpec((R, 1), lambda i, j: (i, 0))]
    else:
        kern = _apply_kernel_nov
        arrays = (x2, scale_rows)
        in_specs = [pl.BlockSpec((R, T), lambda i, j: (i, j)),
                    pl.BlockSpec((R, 1), lambda i, j: (i, 0))]
    return pl.pallas_call(
        kern,
        grid=(n_rb, n_tiles),
        out_shape=jax.ShapeDtypeStruct((M, HW), out_dtype),
        in_specs=in_specs,
        out_specs=pl.BlockSpec((R, T), lambda i, j: (i, j)),
        compiler_params=_mosaic_params(
            ("parallel", "parallel"),
            R * T * (x2.dtype.itemsize + jnp.dtype(out_dtype).itemsize + 4)),
    )(*arrays)


# -----------------------------------------------------------------------------
# affine-only kernel (non_linear=False):  y = x * gamma + beta
# -----------------------------------------------------------------------------
def _affine_kernel(x_ref, g_ref, b_ref, o_ref):
    x = x_ref[...].astype(jnp.float32)
    o_ref[...] = (x * g_ref[...] + b_ref[...]).astype(o_ref.dtype)


def evonorm_affine_forward(x, gamma, beta, max_lane_tile=_MAX_LANE_TILE):
    N, C, H, W = x.shape
    HW = H * W
    M = N * C
    x2 = x.reshape(M, HW)                              # free view
    g_rows = jnp.broadcast_to(gamma.reshape(1, C).astype(jnp.float32), (N, C)).reshape(M, 1)
    b_rows = jnp.broadcast_to(beta.reshape(1, C).astype(jnp.float32), (N, C)).reshape(M, 1)
    R, T = _plan_tiled(M, HW, max_lane_tile=max_lane_tile)
    y2 = pl.pallas_call(
        _affine_kernel,
        grid=(pl.cdiv(M, R), pl.cdiv(HW, T)),
        out_shape=jax.ShapeDtypeStruct((M, HW), x.dtype),
        in_specs=[pl.BlockSpec((R, T), lambda i, j: (i, j)),
                  pl.BlockSpec((R, 1), lambda i, j: (i, 0)),
                  pl.BlockSpec((R, 1), lambda i, j: (i, 0))],
        out_specs=pl.BlockSpec((R, T), lambda i, j: (i, j)),
        compiler_params=_mosaic_params(
            ("parallel", "parallel"), R * T * (2 * x.dtype.itemsize + 4)),
    )(x2, g_rows, b_rows)
    return y2.reshape(N, C, H, W)


# -----------------------------------------------------------------------------
# EvoNorm S0/S1/S2 forward
# -----------------------------------------------------------------------------
def evonorm_s_forward(x, gamma, v, groups, eps, version="S0", efficient=False,
                      fused_block_bytes=_FUSED_BLOCK_BYTES,
                      max_lane_tile=_MAX_LANE_TILE):
    N, C, H, W = x.shape
    HW = H * W
    M = N * C
    G = int(groups)
    if C % G != 0:
        raise ValueError("channels must be divisible by groups")
    cg = C // G
    cnt = float(cg * HW)
    rms = (version == "S2")
    use_v = (version == "S0") and (not efficient)

    x2 = x.reshape(M, HW)                              # free view, no transpose
    g_rows = jnp.broadcast_to(gamma.reshape(1, C).astype(jnp.float32), (N, C)).reshape(M, 1)
    v_rows = (jnp.broadcast_to(v.reshape(1, C).astype(jnp.float32), (N, C)).reshape(M, 1)
              if use_v else None)

    R = _plan_fused(N, C, HW, fused_block_bytes)
    if R is not None:
        y2 = _fused_forward(x2, g_rows, v_rows, R=R, cg=cg, cnt=cnt, eps=eps,
                            rms=rms, use_v=use_v, out_dtype=x.dtype)
    else:
        y2 = _two_pass_forward(x2, g_rows, v_rows, N=N, C=C, G=G, cg=cg, cnt=cnt,
                               eps=eps, rms=rms, use_v=use_v, out_dtype=x.dtype,
                               max_lane_tile=max_lane_tile)
    return y2.reshape(N, C, H, W)


# -----------------------------------------------------------------------------
# ParamEvoNorm2D (JAX port; state is plain JAX arrays)
# -----------------------------------------------------------------------------
class ParamEvoNorm2D:
    def __init__(self, input, n_groups=1, non_linear=True, version="S0",
                 efficient=False, affine=True, momentum=0.9, eps=1e-5,
                 groups=32, training=True):
        if version not in ("B0", "S0", "S1", "S2"):
            raise ValueError("Invalid EvoNorm version")
        self._n_groups = n_groups
        self.non_linear = non_linear
        self.version = version
        self.training = training
        self.momentum = momentum
        self.efficient = efficient
        self.groups = input // 2 * n_groups
        self.eps = eps
        self.insize = input
        self.affine = affine
        C = n_groups * input
        if affine:
            self.gamma = jnp.ones((1, C, 1, 1), jnp.float32)
            self.beta = jnp.zeros((1, C, 1, 1), jnp.float32)
            self.v = jnp.ones((1, C, 1, 1), jnp.float32) if non_linear else None
        else:
            self.gamma = None
            self.beta = None
            self.v = None
        self.running_var = jnp.ones((1, C, 1, 1), jnp.float32)
        self._param_length = None

    # ---- parameter plumbing (pure Python/JAX glue) ----
    @property
    def gamma_weight_length(self):
        return self.insize

    @property
    def beta_weight_length(self):
        return self.insize

    @property
    def v_weight_length(self):
        return self.insize

    @property
    def param_length(self):
        if self._param_length is None and self.non_linear:
            self._param_length = (self.gamma_weight_length
                                  + self.beta_weight_length
                                  + self.v_weight_length)
        else:
            self._param_length = self.gamma_weight_length + self.beta_weight_length
        return self._param_length

    def set_parameters(self, theta, reinitialize=False):
        theta = jnp.asarray(theta)
        if theta.ndim == 1:
            theta = theta[None, :]
        gl, bl = self.gamma_weight_length, self.beta_weight_length
        self._set_gamma_weight(theta[:, :gl], reinitialize)
        self._set_beta_weight(theta[:, gl:gl + bl], reinitialize)
        if self.non_linear:
            self._set_v_weight(theta[:, gl + bl:], reinitialize)

    def _set_gamma_weight(self, weight, reinitialize=False):
        C = self._n_groups * self.insize
        if reinitialize:
            weight = jnp.ones((1, C, 1, 1), jnp.float32)
        self.gamma = jnp.asarray(weight).reshape(1, C, 1, 1)

    def _set_beta_weight(self, weight, reinitialize=False):
        C = self._n_groups * self.insize
        if reinitialize:
            weight = jnp.zeros((1, C, 1, 1), jnp.float32)
        self.beta = jnp.asarray(weight).reshape(1, C, 1, 1)

    def _set_v_weight(self, weight, reinitialize=False):
        C = self._n_groups * self.insize
        if reinitialize:
            weight = jnp.ones((1, C, 1, 1), jnp.float32)
        self.v = jnp.asarray(weight).reshape(1, C, 1, 1)

    def _check_input_dim(self, x):
        if x.ndim != 4:
            raise ValueError("expected 4D input (got {}D input)".format(x.ndim))

    # ---- forward ----
    def _forward_b0(self, x):
        # TODO(synk): B0 path (running-var update + max(batch_std, v*x + instance_std))
        # is kept as a pure-JAX fallback; the running_var attribute update is a Python
        # side effect and is not jit/Pallas friendly.
        if self.training:
            var = jnp.var(x, axis=(0, 2, 3), keepdims=True)     # unbiased=False
            self.running_var = (self.momentum * self.running_var
                                + (1.0 - self.momentum) * var)
        else:
            var = self.running_var
        if self.non_linear:
            inst_var = jnp.var(x, axis=(2, 3), keepdims=True, ddof=1)
            inst_var = jnp.where(jnp.isnan(inst_var), 0.0, inst_var)
            inst_std = jnp.sqrt(inst_var + self.eps)
            den = jnp.maximum(jnp.sqrt(var + self.eps), self.v * x + inst_std)
            return x / den * self.gamma + self.beta
        return evonorm_affine_forward(x, self.gamma, self.beta)

    def forward(self, x, keep_group_dim=True):
        self._check_input_dim(x)
        if self.version in ("S0", "S1", "S2"):
            if self.non_linear:
                v = self.v if self.v is not None else jnp.ones_like(self.gamma)
                res = evonorm_s_forward(x, self.gamma, v, self.groups, self.eps,
                                        version=self.version,
                                        efficient=self.efficient)
            else:
                res = evonorm_affine_forward(x, self.gamma, self.beta)
        else:  # "B0"
            res = self._forward_b0(x)
        if self._n_groups > 1 and keep_group_dim:
            res = res.reshape(x.shape[0], self._n_groups, -1, x.shape[2], x.shape[3])
        return res

    __call__ = forward


# -----------------------------------------------------------------------------
# pure-JAX references for verification
# -----------------------------------------------------------------------------
def _ref_group_std(x, groups, eps):
    N, C, H, W = x.shape
    xg = x.reshape(N, groups, C // groups, H, W)
    var = jnp.var(xg, axis=(2, 3, 4), keepdims=True, ddof=1)
    std = jnp.sqrt(var + eps)
    return jnp.broadcast_to(std, xg.shape).reshape(N, C, H, W)


def _ref_group_mean(x, groups, eps):
    N, C, H, W = x.shape
    xg = (x * x).reshape(N, groups, C // groups, H, W)
    m = jnp.mean(xg, axis=(2, 3, 4), keepdims=True)
    return jnp.broadcast_to(jnp.sqrt(m + eps), xg.shape).reshape(N, C, H, W)


def _ref_forward(x, gamma, v, groups, eps, version, efficient=False):
    if version == "S0" and not efficient:
        num = x * jax.nn.sigmoid(v * x)
    else:
        num = x * jax.nn.sigmoid(x)
    den = _ref_group_mean(x, groups, eps) if version == "S2" else _ref_group_std(x, groups, eps)
    return num / den * gamma


# -----------------------------------------------------------------------------
# main
# -----------------------------------------------------------------------------
if __name__ == "__main__":
    key = jax.random.PRNGKey(0)
    k1, k2, k3, k4 = jax.random.split(key, 4)

    N, insize, H, W = 2, 4, 16, 16
    n_groups = 1
    C = n_groups * insize
    x = jax.random.normal(k1, (N, C, H, W), jnp.float32) * 1.5 + 0.3

    TOL = dict(atol=5e-4, rtol=5e-4)

    # --- S0 (fused single-pass path) ---
    m = ParamEvoNorm2D(insize, n_groups=n_groups, non_linear=True, version="S0",
                       efficient=False, affine=True, eps=1e-5)
    m.gamma = jnp.linspace(0.8, 1.2, C, dtype=jnp.float32).reshape(1, C, 1, 1)
    m.beta = jnp.linspace(-0.1, 0.1, C, dtype=jnp.float32).reshape(1, C, 1, 1)
    m.v = jnp.linspace(0.5, 1.5, C, dtype=jnp.float32).reshape(1, C, 1, 1)
    y = jax.block_until_ready(m.forward(x))
    y_ref = _ref_forward(x, m.gamma, m.v, m.groups, m.eps, "S0")
    assert y.shape == x.shape
    assert jnp.allclose(y, y_ref, **TOL), "S0 output mismatch"

    # --- S2 (rms-style denominator, sigmoid(x) numerator, no v stream) ---
    m2 = ParamEvoNorm2D(insize, n_groups=n_groups, version="S2")
    m2.gamma, m2.v = m.gamma, m.v
    y2 = jax.block_until_ready(m2.forward(x))
    y2_ref = _ref_forward(x, m2.gamma, m2.v, m2.groups, m2.eps, "S2")
    assert jnp.allclose(y2, y2_ref, **TOL), "S2 output mismatch"

    # --- non_linear=False (affine-only kernel) ---
    m3 = ParamEvoNorm2D(insize, n_groups=n_groups, non_linear=False, version="S0")
    m3.gamma, m3.beta = m.gamma, m.beta
    y3 = jax.block_until_ready(m3.forward(x))
    assert jnp.allclose(y3, x * m3.gamma + m3.beta, atol=1e-5, rtol=1e-5), "affine mismatch"

    # --- n_groups > 1 (grouped-channel output reshape) ---
    ng = 2
    C2 = ng * insize
    xg = jax.random.normal(k2, (N, C2, H, W), jnp.float32)
    m4 = ParamEvoNorm2D(insize, n_groups=ng, version="S0")
    m4.gamma = jnp.linspace(0.9, 1.1, C2, dtype=jnp.float32).reshape(1, C2, 1, 1)
    m4.v = jnp.linspace(0.7, 1.3, C2, dtype=jnp.float32).reshape(1, C2, 1, 1)
    y4 = jax.block_until_ready(m4.forward(xg))
    y4_ref = _ref_forward(xg, m4.gamma, m4.v, m4.groups, m4.eps, "S0").reshape(
        N, ng, C2 // ng, H, W)
    assert y4.shape == (N, ng, C2 // ng, H, W)
    assert jnp.allclose(y4, y4_ref, **TOL), "grouped output mismatch"

    # --- ragged HW (not a multiple of 128): fused path + forced two-pass fallback
    #     (small lane tile -> exercises split stats grid + tail masking, no padding) ---
    Hr = Wr = 20                                        # HW = 400
    xr = jax.random.normal(k3, (N, C, Hr, Wr), jnp.float32) * 0.8 - 0.2
    gR = jnp.linspace(0.8, 1.2, C, dtype=jnp.float32).reshape(1, C, 1, 1)
    vR = jnp.linspace(0.5, 1.5, C, dtype=jnp.float32).reshape(1, C, 1, 1)
    grp = insize // 2
    yr_ref = _ref_forward(xr, gR, vR, grp, 1e-5, "S0")
    yr_fused = jax.block_until_ready(
        evonorm_s_forward(xr, gR, vR, grp, 1e-5, version="S0"))
    assert jnp.allclose(yr_fused, yr_ref, **TOL), "fused ragged-HW mismatch"
    yr_tp = jax.block_until_ready(
        evonorm_s_forward(xr, gR, vR, grp, 1e-5, version="S0",
                          fused_block_bytes=0, max_lane_tile=128))
    assert jnp.allclose(yr_tp, yr_ref, **TOL), "two-pass fallback mismatch"

    # --- fused path with a partial (phantom-sample) boundary row block ---
    N3 = 3
    x5 = jax.random.normal(k4, (N3, C, H, W), jnp.float32)
    y5_ref = _ref_forward(x5, gR, vR, grp, 1e-5, "S0")
    y5 = jax.block_until_ready(
        evonorm_s_forward(x5, gR, vR, grp, 1e-5, version="S0",
                          fused_block_bytes=2 * C * H * W * 4))   # only 2 samples/block
    assert jnp.allclose(y5, y5_ref, **TOL), "fused partial-block mismatch"

    print("KERNEL_OK")
</pallas_src>

<mosaic_0001>
module attributes {stable_mosaic.version = 11 : i64} {
  func.func @_fused_kernel_v(%arg0: i32, %arg1: memref<8x256xf32, #tpu.memory_space<vmem>>, %arg2: memref<8x1xf32, #tpu.memory_space<vmem>>, %arg3: memref<8x1xf32, #tpu.memory_space<vmem>>, %arg4: memref<8x256xf32, #tpu.memory_space<vmem>>) attributes {dimension_semantics = [#tpu.dimension_semantics<parallel>], iteration_bounds = array<i64: 1>, scalar_prefetch = 0 : i64, scratch_operands = 0 : i64, tpu.core_type = #tpu.core_type<tc>, window_params = [{transform_indices = @transform_0, window_bounds = array<i64: 8, 256>}, {transform_indices = @transform_1, window_bounds = array<i64: 8, 1>}, {transform_indices = @transform_2, window_bounds = array<i64: 8, 1>}, {transform_indices = @transform_3, window_bounds = array<i64: 8, 256>}]} {
    %c0 = arith.constant 0 : index
    %c0_0 = arith.constant 0 : index
    %0 = vector.load %arg1[%c0, %c0_0] : memref<8x256xf32, #tpu.memory_space<vmem>>, vector<8x256xf32>
    %cst = arith.constant dense<0.000000e+00> : vector<8xf32>
    %1 = vector.multi_reduction <add>, %0, %cst [1] : vector<8x256xf32> to vector<8xf32>
    %2 = vector.shape_cast %1 : vector<8xf32> to vector<8x1xf32>
    %3 = vector.shape_cast %2 : vector<8x1xf32> to vector<4x2x1xf32>
    %4 = vector.extract_strided_slice %3 {offsets = [0, 0, 0], sizes = [4, 1, 1], strides = [1, 1, 1]} : vector<4x2x1xf32> to vector<4x1x1xf32>
    %5 = vector.extract_strided_slice %3 {offsets = [0, 1, 0], sizes = [4, 1, 1], strides = [1, 1, 1]} : vector<4x2x1xf32> to vector<4x1x1xf32>
    %6 = arith.addf %4, %5 : vector<4x1x1xf32>
    %cst_1 = arith.constant 0.001953125 : f32
    %7 = vector.broadcast %cst_1 : f32 to vector<4x1x1xf32>
    %8 = arith.mulf %6, %7 : vector<4x1x1xf32>
    %9 = vector.shape_cast %8 : vector<4x1x1xf32> to vector<4x1x1xf32>
    %10 = vector.broadcast %9 : vector<4x1x1xf32> to vector<4x2x1xf32>
    %11 = vector.shape_cast %10 : vector<4x2x1xf32> to vector<8x1xf32>
    %12 = vector.broadcast %11 : vector<8x1xf32> to vector<8x256xf32>
    %13 = arith.subf %0, %12 : vector<8x256xf32>
    %14 = arith.mulf %13, %13 : vector<8x256xf32>
    %cst_2 = arith.constant dense<0.000000e+00> : vector<8xf32>
    %15 = vector.multi_reduction <add>, %14, %cst_2 [1] : vector<8x256xf32> to vector<8xf32>
    %16 = vector.shape_cast %15 : vector<8xf32> to vector<8x1xf32>
    %17 = vector.shape_cast %16 : vector<8x1xf32> to vector<4x2x1xf32>
    %18 = vector.extract_strided_slice %17 {offsets = [0, 0, 0], sizes = [4, 1, 1], strides = [1, 1, 1]} : vector<4x2x1xf32> to vector<4x1x1xf32>
    %19 = vector.extract_strided_slice %17 {offsets = [0, 1, 0], sizes = [4, 1, 1], strides = [1, 1, 1]} : vector<4x2x1xf32> to vector<4x1x1xf32>
    %20 = arith.addf %18, %19 : vector<4x1x1xf32>
    %cst_3 = arith.constant 0.00195694715 : f32
    %21 = vector.broadcast %cst_3 : f32 to vector<4x1x1xf32>
    %22 = arith.mulf %20, %21 : vector<4x1x1xf32>
    %cst_4 = arith.constant 9.99999974E-6 : f32
    %23 = vector.broadcast %cst_4 : f32 to vector<4x1x1xf32>
    %24 = arith.addf %22, %23 : vector<4x1x1xf32>
    %25 = math.rsqrt %24 : vector<4x1x1xf32>
    %c0_5 = arith.constant 0 : index
    %c0_6 = arith.constant 0 : index
    %26 = vector.load %arg3[%c0_5, %c0_6] : memref<8x1xf32, #tpu.memory_space<vmem>>, vector<8x1xf32>
    %27 = vector.shape_cast %25 : vector<4x1x1xf32> to vector<4x1x1xf32>
    %28 = vector.broadcast %27 : vector<4x1x1xf32> to vector<4x2x1xf32>
    %29 = vector.shape_cast %28 : vector<4x2x1xf32> to vector<8x1xf32>
    %30 = arith.mulf %26, %29 : vector<8x1xf32>
    %c0_7 = arith.constant 0 : index
    %c0_8 = arith.constant 0 : index
    %31 = vector.load %arg2[%c0_7, %c0_8] : memref<8x1xf32, #tpu.memory_space<vmem>>, vector<8x1xf32>
    %32 = vector.broadcast %31 : vector<8x1xf32> to vector<8x256xf32>
    %33 = arith.mulf %32, %0 : vector<8x256xf32>
    %cst_9 = arith.constant 5.000000e-01 : f32
    %34 = vector.broadcast %cst_9 : f32 to vector<8x256xf32>
    %35 = arith.mulf %34, %33 : vector<8x256xf32>
    %36 = math.tanh %35 : vector<8x256xf32>
    %cst_10 = arith.constant 1.000000e+00 : f32
    %37 = vector.broadcast %cst_10 : f32 to vector<8x256xf32>
    %38 = arith.addf %37, %36 : vector<8x256xf32>
    %cst_11 = arith.constant 5.000000e-01 : f32
    %39 = vector.broadcast %cst_11 : f32 to vector<8x256xf32>
    %40 = arith.mulf %39, %38 : vector<8x256xf32>
    %41 = arith.mulf %0, %40 : vector<8x256xf32>
    %42 = vector.broadcast %30 : vector<8x1xf32> to vector<8x256xf32>
    %43 = arith.mulf %41, %42 : vector<8x256xf32>
    %c0_12 = arith.constant 0 : index
    %c0_13 = arith.constant 0 : index
    %44 = vector.load %arg4[%c0_12, %c0_13] : memref<8x256xf32, #tpu.memory_space<vmem>>, vector<8x256xf32>
    tpu.vector_store %arg4[%c0_12, %c0_13], %43 {strides = array<i32>} : memref<8x256xf32, #tpu.memory_space<vmem>>, vector<8x256xf32>,
    return
  }
  func.func @transform_0(%arg0: i32) -> (i32, i32) {
    %c0_i32 = arith.constant 0 : i32
    %c0_i32_0 = arith.constant 0 : i32
    return %arg0, %c0_i32 : i32, i32
  }
  func.func @transform_1(%arg0: i32) -> (i32, i32) {
    %c0_i32 = arith.constant 0 : i32
    %c0_i32_0 = arith.constant 0 : i32
    return %arg0, %c0_i32 : i32, i32
  }
  func.func @transform_2(%arg0: i32) -> (i32, i32) {
    %c0_i32 = arith.constant 0 : i32
    %c0_i32_0 = arith.constant 0 : i32
    return %arg0, %c0_i32 : i32, i32
  }
  func.func @transform_3(%arg0: i32) -> (i32, i32) {
    %c0_i32 = arith.constant 0 : i32
    %c0_i32_0 = arith.constant 0 : i32
    return %arg0, %c0_i32 : i32, i32
  }
}

</mosaic_0001>

<llo_original>
// kernel: tpu_custom_call.1
$region0: #{tpu_custom_call.1}
  #allocation0 [shape = 'u32[]', space=smem, size = 0x4, offset = 0x4, fixed_abs, tag = 'smem constant byte address 0x4 - core index']
  #allocation1 [shape = 'u32[72,128]{1,0:T(1,128)}', space=vmem, size = 0x9000, scoped, tag = 'internal scratch']
  %s0 = inlined_call_operand.vmem [shape: f32[8,256], index: 0, kind: input, shape index: {}]
  %s1 = inlined_call_operand.vmem [shape: f32[8,1], index: 1, kind: input, shape index: {}]
  %s2 = inlined_call_operand.vmem [shape: f32[8,1], index: 2, kind: input, shape index: {}]
  %s3 = inlined_call_operand.hbm [shape: f32[8,256], index: 3, kind: output, shape index: {}]
  %s4 = sld [smem:[#allocation0]]
  $region22: #{tpu_custom_call.1} parent=0
    _
  %s6 = ssub.s32 1, %s4
  %s7 = scalar_select 0, %s6, %s4
  $region1: #{tpu_custom_call.1} parent=0
    #allocation2 [shape = 'u8[8192]{0}', space=vmem, size = 0x2000, scoped, tag = 'output window, operand 0, single buffered']
    #allocation3 [shape = 's32[1]{0}', space=sflag, size = 0x4, scoped, tag = 'scoped memory for tpu_custom_call.1']
    %8 = vsyncpa [#allocation3], 0
    // Predicated region
    $region2: #{tpu_custom_call.1} parent=1 // pred_check
      _
    $region3: #{tpu_custom_call.1} parent=1 // pred_check_branch
      %10 = sbr.rel (0) target = $region5
    $region4: #{tpu_custom_call.1} parent=1 // pred_region
      _
    $region5: #{tpu_custom_call.1} parent=1 // pred_fallthru
      _
    // Predicated region
    $region6: #{tpu_custom_call.1} parent=1 // pred_check
      _
    $region7: #{tpu_custom_call.1} parent=1 // pred_check_branch
      %12 = sbr.rel (0) target = $region9
    $region8: #{tpu_custom_call.1} parent=1 // pred_region
      _
    $region9: #{tpu_custom_call.1} parent=1 // pred_fallthru
      _
    // Predicated region
    $region10: #{tpu_custom_call.1} parent=1 // pred_check
      _
    $region11: #{tpu_custom_call.1} parent=1 // pred_check_branch
      %14 = sbr.rel (0) target = $region13
    $region12: #{tpu_custom_call.1} parent=1 // pred_region
      _
    $region13: #{tpu_custom_call.1} parent=1 // pred_fallthru
      _
    %v15 = vld [vmem:[%s0] sm:$0xff]
    %v16 = vld [vmem:[%s0 + $0x8] sm:$0xff]
    %v17 = vadd.f32 %v15, %v16
    %18 = vadd.xlane.f32.xlu0 %v17
    %v19 = vpop.xlane.xlu0 %18
    %v22 = vunpack.c.l.s4 269488144
    %v23 = vunpack.c.0.s8 %v22
    %v24 = vperm.slane %v19, %v23
    %v26 = vunpack.c.l.s4 842150450
    %v27 = vunpack.c.0.s8 %v26
    %v28 = vperm.slane %v19, %v27
    %v30 = vunpack.c.l.s4 1414812756
    %v31 = vunpack.c.0.s8 %v30
    %v32 = vperm.slane %v19, %v31
    %v34 = vunpack.c.l.s4 1987475062
    %v35 = vunpack.c.0.s8 %v34
    %v36 = vperm.slane %v19, %v35
    %v41 = vrot.slane %v24, 7
    %v42 = vrot.slane %v41, 2
    %v43 = vrot.slane %v28, 7
    %v44 = vrot.slane %v43, 2
    %v45 = vrot.slane %v32, 7
    %v46 = vrot.slane %v45, 2
    %v47 = vrot.slane %v36, 7
    %v48 = vrot.slane %v47, 2
    %v53 = vadd.f32 %v24, %v42
    %v54 = vadd.f32 %v28, %v44
    %v55 = vadd.f32 %v32, %v46
    %v56 = vadd.f32 %v36, %v48
    %v57 = vmul.f32 %v53, 0.001953125
    %v58 = vmul.f32 %v54, 0.001953125
    %v59 = vmul.f32 %v55, 0.001953125
    %v60 = vmul.f32 %v56, 0.001953125
    %v61 = vperm.slane %v57, 0
    %v62 = vperm.slane %v58, 0
    %v63 = vperm.slane %v59, 0
    %v64 = vperm.slane %v60, 0
    %66 = vset.pattern.permute.xlu0 0
    %67 = vperm.xlu0 %66, %v61
    %v68 = vpop.permute.xlu0 %67
    %v71 = vunpack.c.l.s4 269488144
    %v72 = vunpack.c.0.s8 %v71
    %v73 = vperm.slane %v68, %v72
    %75 = vset.pattern.permute.xlu0 0
    %76 = vperm.xlu0 %75, %v62
    %v77 = vpop.permute.xlu0 %76
    %v80 = vunpack.c.l.s4 269488144
    %v81 = vunpack.c.0.s8 %v80
    %v82 = vperm.slane %v77, %v81
    %84 = vset.pattern.permute.xlu0 0
    %85 = vperm.xlu0 %84, %v63
    %v86 = vpop.permute.xlu0 %85
    %v89 = vunpack.c.l.s4 269488144
    %v90 = vunpack.c.0.s8 %v89
    %v91 = vperm.slane %v86, %v90
    %93 = vset.pattern.permute.xlu0 0
    %94 = vperm.xlu0 %93, %v64
    %v95 = vpop.permute.xlu0 %94
    %v98 = vunpack.c.l.s4 269488144
    %v99 = vunpack.c.0.s8 %v98
    %v100 = vperm.slane %v95, %v99
    %105 = vst [vmem:[#allocation1] ss:$4 sm:$0xff] %v73
    %s106 = scalar_lea.vmem [#allocation1], 1
    %107 = vst [vmem:[%s106] ss:$4 sm:$0xff] %v82
    %s108 = scalar_lea.vmem [#allocation1], 2
    %109 = vst [vmem:[%s108] ss:$4 sm:$0xff] %v91
    %s110 = scalar_lea.vmem [#allocation1], 3
    %111 = vst [vmem:[%s110] ss:$4 sm:$0xff] %v100
    %v112 = vld.sshfl [vmem:[#allocation1] sm:$0xff pattern:$0x73625140]
    %v113 = vld.sshfl [vmem:[#allocation1 + $0x8] sm:$0xff pattern:$0x73625140]
    %v116 = vsub.f32 %v15, %v112
    %v117 = vsub.f32 %v16, %v113
    %v118 = vmul.f32 %v116, %v116
    %v119 = vmul.f32 %v117, %v117
    %v120 = vadd.f32 %v118, %v119
    %121 = vadd.xlane.f32.xlu0 %v120
    %v122 = vpop.xlane.xlu0 %121
    %v125 = vunpack.c.l.s4 269488144
    %v126 = vunpack.c.0.s8 %v125
    %v127 = vperm.slane %v122, %v126
    %v129 = vunpack.c.l.s4 842150450
    %v130 = vunpack.c.0.s8 %v129
    %v131 = vperm.slane %v122, %v130
    %v133 = vunpack.c.l.s4 1414812756
    %v134 = vunpack.c.0.s8 %v133
    %v135 = vperm.slane %v122, %v134
    %v137 = vunpack.c.l.s4 1987475062
    %v138 = vunpack.c.0.s8 %v137
    %v139 = vperm.slane %v122, %v138
    %v144 = vrot.slane %v127, 7
    %v145 = vrot.slane %v144, 2
    %v146 = vrot.slane %v131, 7
    %v147 = vrot.slane %v146, 2
    %v148 = vrot.slane %v135, 7
    %v149 = vrot.slane %v148, 2
    %v150 = vrot.slane %v139, 7
    %v151 = vrot.slane %v150, 2
    %v156 = vadd.f32 %v127, %v145
    %v157 = vadd.f32 %v131, %v147
    %v158 = vadd.f32 %v135, %v149
    %v159 = vadd.f32 %v139, %v151
    %v160 = vmul.f32 %v156, 0.0019569471
    %v161 = vmul.f32 %v157, 0.0019569471
    %v162 = vmul.f32 %v158, 0.0019569471
    %v163 = vmul.f32 %v159, 0.0019569471
    %v164 = vadd.f32 %v160, 1e-05
    %v165 = vadd.f32 %v161, 1e-05
    %v166 = vadd.f32 %v162, 1e-05
    %v167 = vadd.f32 %v163, 1e-05
    %v168 = vrsqrt.pop %v164
    %v169 = vmul.f32 %v168, %v164
    %v170 = vmul.f32 %v169, %v168
    %v171 = vmul.f32 0.5, %v170
    %v172 = vsub.f32 1.5, %v171
    %v173 = vmul.f32 %v168, %v172
    %vm174 = vweird.f32 %v164
    %vm175 = vweird.f32 %v168
    %vm176 = vmor %vm174, %vm175
    %v177 = vsel %vm176, %v168, %v173
    %v178 = vrsqrt.pop %v165
    %v179 = vmul.f32 %v178, %v165
    %v180 = vmul.f32 %v179, %v178
    %v181 = vmul.f32 0.5, %v180
    %v182 = vsub.f32 1.5, %v181
    %v183 = vmul.f32 %v178, %v182
    %vm184 = vweird.f32 %v165
    %vm185 = vweird.f32 %v178
    %vm186 = vmor %vm184, %vm185
    %v187 = vsel %vm186, %v178, %v183
    %v188 = vrsqrt.pop %v166
    %v189 = vmul.f32 %v188, %v166
    %v190 = vmul.f32 %v189, %v188
    %v191 = vmul.f32 0.5, %v190
    %v192 = vsub.f32 1.5, %v191
    %v193 = vmul.f32 %v188, %v192
    %vm194 = vweird.f32 %v166
    %vm195 = vweird.f32 %v188
    %vm196 = vmor %vm194, %vm195
    %v197 = vsel %vm196, %v188, %v193
    %v198 = vrsqrt.pop %v167
    %v199 = vmul.f32 %v198, %v167
    %v200 = vmul.f32 %v199, %v198
    %v201 = vmul.f32 0.5, %v200
    %v202 = vsub.f32 1.5, %v201
    %v203 = vmul.f32 %v198, %v202
    %vm204 = vweird.f32 %v167
    %vm205 = vweird.f32 %v198
    %vm206 = vmor %vm204, %vm205
    %v207 = vsel %vm206, %v198, %v203
    %v208 = vld [vmem:[%s2] sm:$0xff]
    %v209 = vperm.slane %v177, 0
    %v210 = vperm.slane %v187, 0
    %v211 = vperm.slane %v197, 0
    %v212 = vperm.slane %v207, 0
    %217 = vst [vmem:[#allocation1] ss:$4 sm:$0xff] %v209
    %s218 = scalar_lea.vmem [#allocation1], 1
    %219 = vst [vmem:[%s218] ss:$4 sm:$0xff] %v210
    %s220 = scalar_lea.vmem [#allocation1], 2
    %221 = vst [vmem:[%s220] ss:$4 sm:$0xff] %v211
    %s222 = scalar_lea.vmem [#allocation1], 3
    %223 = vst [vmem:[%s222] ss:$4 sm:$0xff] %v212
    %v224 = vld.sshfl [vmem:[#allocation1] sm:$0xff pattern:$0x73625140]
    %v226 = vmul.f32 %v208, %v224
    %v227 = vld [vmem:[%s1] sm:$0xff]
    %229 = vset.pattern.permute.xlu0 0
    %230 = vperm.xlu0 %229, %v227
    %v231 = vpop.permute.xlu0 %230
    %v233 = vmul.f32 %v231, %v15
    %v234 = vmul.f32 %v231, %v16
    %v235 = vmul.f32 %v233, 0.5
    %v236 = vmul.f32 %v234, 0.5
    %v237 = vtanh.pop %v235
    %v238 = vtanh.pop %v236
    %v239 = vadd.f32 %v237, 1.0
    %v240 = vadd.f32 %v238, 1.0
    %v241 = vmul.f32 %v239, 0.5
    %v242 = vmul.f32 %v240, 0.5
    %v243 = vmul.f32 %v15, %v241
    %v244 = vmul.f32 %v16, %v242
    %246 = vset.pattern.permute.xlu0 0
    %247 = vperm.xlu0 %246, %v226
    %v248 = vpop.permute.xlu0 %247
    %v250 = vmul.f32 %v243, %v248
    %v251 = vmul.f32 %v244, %v248
    %252 = vst [vmem:[#allocation2] sm:$0xff] %v250
    %253 = vst [vmem:[#allocation2 + $0x8] sm:$0xff] %v251
    // Predicated region
    $region14: #{tpu_custom_call.1} parent=1 // pred_check
      _
    $region15: #{tpu_custom_call.1} parent=1 // pred_check_branch
      %255 = sbr.rel (0) target = $region17
    $region16: #{tpu_custom_call.1} parent=1 // pred_region
      %257 = vsyncadd [#allocation3], 0
      %s259 = sshll.u32 [#allocation2], 4
      %s260 = int_to_ptr.vmem [resolvable:$true] %s259
      %s261 = sshll.u32 %s3, 4
      %s262 = int_to_ptr.hbm [resolvable:$true] %s261
      %264 = dma.vmem_to_hbm [thread:$0]  %s260, 256, %s262, [#allocation3]
    $region17: #{tpu_custom_call.1} parent=1 // pred_fallthru
      _
    // Predicated region
    $region18: #{tpu_custom_call.1} parent=1 // pred_check
      _
    $region19: #{tpu_custom_call.1} parent=1 // pred_check_branch
      %266 = sbr.rel (0) target = $region21
    $region20: #{tpu_custom_call.1} parent=1 // pred_region
      %268 = dma.done [#allocation3], 256
    $region21: #{tpu_custom_call.1} parent=1 // pred_fallthru
      _
    %269 = vsyncpa [#allocation3], 1

</llo_original>
